<compile_context>
chip_gen: v7x
topology: tpu7x:2x2x1
jax: 0.10.0
libtpu: 0.0.40
codegen_flags: <defaults>
</compile_context>

<pallas_src>
import jax
import jax.numpy as jnp
from jax.experimental import pallas as pl
from jax.experimental.pallas import tpu as pltpu


def _round_up(x, m):
    return (x + m - 1) // m * m


def _vmem_capacity_bytes():
    """Physical VMEM per core; conservative (v7x) fallback if query fails."""
    try:
        info = pltpu.get_tpu_info()
        cap = getattr(info, "vmem_capacity_bytes", None)
        if cap:
            return int(cap)
    except Exception:
        pass
    return 64 * 1024 * 1024


def _pick_tile(dim, align, tmax):
    """Tile <= tmax: full dim if it fits, else prefer an exact `align`-multiple
    divisor (no ragged edge / no wasted MXU work), else a ragged tmax tile."""
    if dim <= tmax:
        return dim
    t = (tmax // align) * align
    floor = max(align, tmax // 8)
    while t >= floor:
        if dim % t == 0:
            return t
        t -= align
    return (tmax // align) * align


# ---------------- kernels ----------------

def _mm_bias_single_kernel(x_ref, w_ref, b_ref, o_ref):
    # One MXU pass: out = x @ w + bias (f32 accumulate).
    o_ref[...] = (
        jnp.dot(x_ref[...], w_ref[...], preferred_element_type=jnp.float32)
        + b_ref[...]
    ).astype(o_ref.dtype)


def _mm_bias_tiled_kernel(x_ref, w_ref, b_ref, o_ref):
    k = pl.program_id(2)

    @pl.when(k == 0)
    def _init():
        # Initialize the resident output block with the broadcast bias; no
        # separate accumulator scratch, no finalize add+copy.
        o_ref[...] = jnp.broadcast_to(b_ref[...], o_ref.shape)

    o_ref[...] += jnp.dot(
        x_ref[...], w_ref[...], preferred_element_type=jnp.float32
    )


# ---------------- wrapper ----------------

def mm_plus_bias(x, w, b, *, force_tiled=False, tm=None, tn=None, tk=None):
    """Computes x @ w + b with a Pallas TPU kernel.

    x: (M, K) float32, w: (K, N) float32, b: (N,) float32 (broadcast over rows)
    """
    M, K = x.shape
    K2, N = w.shape
    assert K == K2, f"inner dims mismatch: {K} vs {K2}"
    assert b.shape == (N,)
    assert x.dtype == jnp.float32, "accumulate-in-output path assumes f32"

    b2d = b.reshape(1, N)
    budget = min(_vmem_capacity_bytes() // 2, 48 * 1024 * 1024)

    total_bytes = 4 * (M * K + K * N + M * N + N)

    # ---- Single-block path: whole problem resident in VMEM, no padding. ----
    if not force_tiled and 2 * total_bytes <= budget:
        vmem_lim = min(max(2 * total_bytes + (4 << 20), 8 << 20), budget)
        return pl.pallas_call(
            _mm_bias_single_kernel,
            out_shape=jax.ShapeDtypeStruct((M, N), x.dtype),
            grid_spec=pltpu.PrefetchScalarGridSpec(
                num_scalar_prefetch=0,
                grid=(1,),
                in_specs=[
                    pl.BlockSpec((M, K), lambda i: (0, 0)),
                    pl.BlockSpec((K, N), lambda i: (0, 0)),
                    pl.BlockSpec((1, N), lambda i: (0, 0)),
                ],
                out_specs=pl.BlockSpec((M, N), lambda i: (0, 0)),
            ),
            compiler_params=pltpu.CompilerParams(
                dimension_semantics=("arbitrary",),
                vmem_limit_bytes=vmem_lim,
            ),
            cost_estimate=pl.CostEstimate(
                flops=2 * M * N * K,
                transcendentals=0,
                bytes_accessed=total_bytes,
            ),
        )(x, w, b2d)

    # ---- Tiled path (large GEMMs). ----
    # M tiles only need multiples of 8 (sublane), so megacore splits M first.
    # N tiles must be 128-multiples (lane) unless tn == N. K is split last and
    # is the only dim that may be zero-padded (garbage along K would pollute
    # valid outputs; ragged M/N edges are handled by masked output writes).
    tk_max = 1024 if budget >= 48 * 1024 * 1024 else 512  # v5e/v6e vs v7x
    tm = _pick_tile(M, 8, tm if tm is not None else 512)
    tn = _pick_tile(N, 128, tn if tn is not None else 512)
    tk = _pick_tile(K, 128, tk if tk is not None else tk_max)

    if tk < K:
        Kp = _round_up(K, tk)
        if Kp != K:
            x = jnp.pad(x, ((0, 0), (0, Kp - K)))
            w = jnp.pad(w, ((0, Kp - K), (0, 0)))
    else:
        Kp = K

    grid = (pl.cdiv(M, tm), pl.cdiv(N, tn), Kp // tk)

    buf_bytes = 4 * (2 * (tm * tk + tk * tn + tn) + 2 * tm * tn)
    vmem_lim = min(max(buf_bytes + (4 << 20), 8 << 20), budget)

    return pl.pallas_call(
        _mm_bias_tiled_kernel,
        out_shape=jax.ShapeDtypeStruct((M, N), x.dtype),
        grid_spec=pltpu.PrefetchScalarGridSpec(
            num_scalar_prefetch=0,
            grid=grid,
            in_specs=[
                pl.BlockSpec((tm, tk), lambda i, j, k: (i, k)),
                pl.BlockSpec((tk, tn), lambda i, j, k: (k, j)),
                pl.BlockSpec((1, tn), lambda i, j, k: (0, j)),
            ],
            out_specs=pl.BlockSpec((tm, tn), lambda i, j, k: (i, j)),
        ),
        compiler_params=pltpu.CompilerParams(
            dimension_semantics=("parallel", "parallel", "arbitrary"),
            vmem_limit_bytes=vmem_lim,
        ),
        cost_estimate=pl.CostEstimate(
            flops=2 * M * N * Kp,
            transcendentals=0,
            bytes_accessed=4 * (M * Kp + Kp * N + M * N + N),
        ),
    )(x, w, b2d)


if __name__ == "__main__":
    key = jax.random.PRNGKey(0)

    # Shapes implied by Model.forward: input (4, 3) @ weights-(K, N) (3, 5) + bias (5,)
    M, K, N = 4, 3, 5
    kx, kw, kb = jax.random.split(key, 3)
    x = jax.random.normal(kx, (M, K), dtype=jnp.float32)
    w = jax.random.normal(kw, (K, N), dtype=jnp.float32)
    b = jax.random.normal(kb, (N,), dtype=jnp.float32)

    out = mm_plus_bias(x, w, b)
    jax.block_until_ready(out)
    ref = jnp.matmul(x, w) + b
    assert out.shape == (M, N)
    assert jnp.allclose(out, ref, atol=1e-5, rtol=1e-5), "mismatch (small)"

    # Medium case: still single-block (fits VMEM), no padding, no slicing.
    M2, K2, N2 = 520, 700, 300
    kx2, kw2, kb2 = jax.random.split(jax.random.PRNGKey(1), 3)
    x2 = jax.random.normal(kx2, (M2, K2), dtype=jnp.float32)
    w2 = jax.random.normal(kw2, (K2, N2), dtype=jnp.float32)
    b2 = jax.random.normal(kb2, (N2,), dtype=jnp.float32)
    ref2 = jnp.matmul(x2, w2) + b2

    out2 = mm_plus_bias(x2, w2, b2)
    jax.block_until_ready(out2)
    assert out2.shape == (M2, N2)
    assert jnp.allclose(out2, ref2, atol=1e-3, rtol=1e-4), "mismatch (medium)"

    # Same problem forced through the tiled (large-GEMM) path to validate it.
    out3 = mm_plus_bias(x2, w2, b2, force_tiled=True)
    jax.block_until_ready(out3)
    assert jnp.allclose(out3, ref2, atol=1e-3, rtol=1e-4), "mismatch (tiled)"

    print("KERNEL_OK")
</pallas_src>

<mosaic_0001>
module attributes {stable_mosaic.version = 11 : i64} {
  func.func @_mm_bias_single_kernel(%arg0: i32, %arg1: memref<4x3xf32, #tpu.memory_space<vmem>>, %arg2: memref<3x5xf32, #tpu.memory_space<vmem>>, %arg3: memref<1x5xf32, #tpu.memory_space<vmem>>, %arg4: memref<4x5xf32, #tpu.memory_space<vmem>>) attributes {dimension_semantics = [#tpu.dimension_semantics<arbitrary>], iteration_bounds = array<i64: 1>, scalar_prefetch = 0 : i64, scratch_operands = 0 : i64, tpu.core_type = #tpu.core_type<tc>, window_params = [{pipeline_mode = #tpu.pipeline_mode<synchronous>, transform_indices = @transform_0, window_bounds = array<i64: 4, 3>}, {pipeline_mode = #tpu.pipeline_mode<synchronous>, transform_indices = @transform_1, window_bounds = array<i64: 3, 5>}, {pipeline_mode = #tpu.pipeline_mode<synchronous>, transform_indices = @transform_2, window_bounds = array<i64: 1, 5>}, {pipeline_mode = #tpu.pipeline_mode<synchronous>, transform_indices = @transform_3, window_bounds = array<i64: 4, 5>}]} {
    %c0 = arith.constant 0 : index
    %c0_0 = arith.constant 0 : index
    %0 = vector.load %arg1[%c0, %c0_0] : memref<4x3xf32, #tpu.memory_space<vmem>>, vector<4x3xf32>
    %c0_1 = arith.constant 0 : index
    %c0_2 = arith.constant 0 : index
    %1 = vector.load %arg2[%c0_1, %c0_2] : memref<3x5xf32, #tpu.memory_space<vmem>>, vector<3x5xf32>
    %cst = arith.constant dense<0.000000e+00> : vector<4x5xf32>
    %2 = tpu.matmul %0, %1, %cst {dimension_numbers = #tpu.dot_dimension_numbers<[1], [0], [0], [1], [0, 0, 1, 1], [], []>} : vector<4x3xf32>, vector<3x5xf32>, vector<4x5xf32> -> vector<4x5xf32>
    %c0_3 = arith.constant 0 : index
    %c0_4 = arith.constant 0 : index
    %3 = vector.load %arg3[%c0_3, %c0_4] : memref<1x5xf32, #tpu.memory_space<vmem>>, vector<1x5xf32>
    %4 = vector.broadcast %3 : vector<1x5xf32> to vector<4x5xf32>
    %5 = arith.addf %2, %4 : vector<4x5xf32>
    %c0_5 = arith.constant 0 : index
    %c0_6 = arith.constant 0 : index
    %6 = vector.load %arg4[%c0_5, %c0_6] : memref<4x5xf32, #tpu.memory_space<vmem>>, vector<4x5xf32>
    tpu.vector_store %arg4[%c0_5, %c0_6], %5 {strides = array<i32>} : memref<4x5xf32, #tpu.memory_space<vmem>>, vector<4x5xf32>,
    return
  }
  func.func @transform_0(%arg0: i32) -> (i32, i32) {
    %c0_i32 = arith.constant 0 : i32
    %c0_i32_0 = arith.constant 0 : i32
    %c0_i32_1 = arith.constant 0 : i32
    return %c0_i32, %c0_i32_0 : i32, i32
  }
  func.func @transform_1(%arg0: i32) -> (i32, i32) {
    %c0_i32 = arith.constant 0 : i32
    %c0_i32_0 = arith.constant 0 : i32
    %c0_i32_1 = arith.constant 0 : i32
    return %c0_i32, %c0_i32_0 : i32, i32
  }
  func.func @transform_2(%arg0: i32) -> (i32, i32) {
    %c0_i32 = arith.constant 0 : i32
    %c0_i32_0 = arith.constant 0 : i32
    %c0_i32_1 = arith.constant 0 : i32
    return %c0_i32, %c0_i32_0 : i32, i32
  }
  func.func @transform_3(%arg0: i32) -> (i32, i32) {
    %c0_i32 = arith.constant 0 : i32
    %c0_i32_0 = arith.constant 0 : i32
    %c0_i32_1 = arith.constant 0 : i32
    return %c0_i32, %c0_i32_0 : i32, i32
  }
}

</mosaic_0001>

<llo_original>
// kernel: tpu_custom_call.1
$region0: #{tpu_custom_call.1}
  #allocation0 [shape = 'u32[]', space=smem, size = 0x4, offset = 0x4, fixed_abs, tag = 'smem constant byte address 0x4 - core index']
  #allocation1 [shape = 'u32[144,128]{1,0:T(1,128)}', space=vmem, size = 0x12000, scoped, tag = 'internal scratch']
  %s0 = inlined_call_operand.hbm [shape: f32[4,3], index: 0, kind: input, shape index: {}]
  %s1 = inlined_call_operand.hbm [shape: f32[3,5], index: 1, kind: input, shape index: {}]
  %s2 = inlined_call_operand.vmem [shape: f32[1,5], index: 2, kind: input, shape index: {}]
  %s3 = inlined_call_operand.hbm [shape: f32[4,5], index: 3, kind: output, shape index: {}]
  %s4 = sld [smem:[#allocation0]]
  $region30: #{tpu_custom_call.1} parent=0
    _
  %s6 = ssub.s32 1, %s4
  %s7 = scalar_select 0, %s6, %s4
  $region1: #{tpu_custom_call.1} parent=0
    #allocation2 [shape = 'u8[2048]{0}', space=vmem, size = 0x800, scoped, tag = 'input window, operand 0, single buffered']
    #allocation3 [shape = 's32[1]{0}', space=sflag, size = 0x4, scoped, tag = 'scoped memory for tpu_custom_call.1']
    #allocation4 [shape = 's32[1]{0}', space=sflag, size = 0x4, scoped, tag = 'scoped memory for tpu_custom_call.1']
    #allocation5 [shape = 'u8[2048]{0}', space=vmem, size = 0x800, scoped, tag = 'input window, operand 1, single buffered']
    #allocation6 [shape = 's32[1]{0}', space=sflag, size = 0x4, scoped, tag = 'scoped memory for tpu_custom_call.1']
    #allocation7 [shape = 'u8[2048]{0}', space=vmem, size = 0x800, scoped, tag = 'output window, operand 0, single buffered']
    %8 = vsyncpa [#allocation3], 0
    %9 = vsyncpa [#allocation6], 0
    %10 = vsyncpa [#allocation4], 0
    // Predicated region
    $region2: #{tpu_custom_call.1} parent=1 // pred_check
      _
    $region3: #{tpu_custom_call.1} parent=1 // pred_check_branch
      %12 = sbr.rel (0) target = $region5
    $region4: #{tpu_custom_call.1} parent=1 // pred_region
      %s14 = ssub.s32 64, 64
      %15 = vsyncadd [#allocation3], %s14
      %s17 = sshll.u32 [#allocation2], 4
      %s18 = int_to_ptr.vmem [resolvable:$true] %s17
      %20 = dma.hbm_to_vmem [thread:$0]  %s0, 64, %s18, [#allocation3]
    $region5: #{tpu_custom_call.1} parent=1 // pred_fallthru
      _
    // Predicated region
    $region6: #{tpu_custom_call.1} parent=1 // pred_check
      _
    $region7: #{tpu_custom_call.1} parent=1 // pred_check_branch
      %22 = sbr.rel (0) target = $region9
    $region8: #{tpu_custom_call.1} parent=1 // pred_region
      %s24 = ssub.s32 64, 64
      %25 = vsyncadd [#allocation6], %s24
      %s27 = sshll.u32 [#allocation5], 4
      %s28 = int_to_ptr.vmem [resolvable:$true] %s27
      %30 = dma.hbm_to_vmem [thread:$0]  %s1, 64, %s28, [#allocation6]
    $region9: #{tpu_custom_call.1} parent=1 // pred_fallthru
      _
    // Predicated region
    $region10: #{tpu_custom_call.1} parent=1 // pred_check
      _
    $region11: #{tpu_custom_call.1} parent=1 // pred_check_branch
      %32 = sbr.rel (0) target = $region13
    $region12: #{tpu_custom_call.1} parent=1 // pred_region
      _
    $region13: #{tpu_custom_call.1} parent=1 // pred_fallthru
      _
    // Predicated region
    $region14: #{tpu_custom_call.1} parent=1 // pred_check
      _
    $region15: #{tpu_custom_call.1} parent=1 // pred_check_branch
      %34 = sbr.rel (0) target = $region17
    $region16: #{tpu_custom_call.1} parent=1 // pred_region
      %35 = dma.done [#allocation3], 64
    $region17: #{tpu_custom_call.1} parent=1 // pred_fallthru
      _
    // Predicated region
    $region18: #{tpu_custom_call.1} parent=1 // pred_check
      _
    $region19: #{tpu_custom_call.1} parent=1 // pred_check_branch
      %37 = sbr.rel (0) target = $region21
    $region20: #{tpu_custom_call.1} parent=1 // pred_region
      %38 = dma.done [#allocation6], 64
    $region21: #{tpu_custom_call.1} parent=1 // pred_fallthru
      _
    %v39 = vld [vmem:[#allocation2] sm:$0xf]
    %v40 = vld [vmem:[#allocation5] sm:$0x7]
    %v41 = vld [vmem:[%s2] sm:$0x1]
    %v43 = vlaneseq
    %v44 = vshrl.u32 %v43, 7
    %v45 = vsub.s32 0, %v44
    %v46 = vrot.slane %v41, %v45
    %vm48 = vcmask 23552
    %v50 = vsel %vm48, %v39, 0
    %vm52 = vcmask 1042432
    %v54 = vsel %vm52, %v40, 0
    %56 = vmatprep.subr.mxu0 0.0
    %57 = vmatpush1.msra.mxu0 %v54
    %58 = vmatprep.subr.mxu0 0.0
    %59 = vmatpush1.msra.mxu0 0.0
    %60 = vmatprep.subr.mxu0 0.0
    %61 = vmatpush1.msra.mxu0 0.0
    %62 = vmatprep.subr.mxu0 0.0
    %63 = vmatpush1.msra.mxu0 0.0
    %64 = vmatprep.subr.mxu0 0.0
    %65 = vmatpush1.msra.mxu0 0.0
    %66 = vmatprep.subr.mxu0 0.0
    %67 = vmatpush1.msra.mxu0 0.0
    %68 = vmatprep.subr.mxu0 0.0
    %69 = vmatpush1.msra.mxu0 0.0
    %70 = vmatprep.subr.mxu0 0.0
    %71 = vmatpush1.msra.mxu0 0.0
    %72 = vmatprep.subr.mxu0 0.0
    %73 = vmatpush1.msra.mxu0 0.0
    %74 = vmatprep.subr.mxu0 0.0
    %75 = vmatpush1.msra.mxu0 0.0
    %76 = vmatprep.subr.mxu0 0.0
    %77 = vmatpush1.msra.mxu0 0.0
    %78 = vmatprep.subr.mxu0 0.0
    %79 = vmatpush1.msra.mxu0 0.0
    %80 = vmatprep.subr.mxu0 0.0
    %81 = vmatpush1.msra.mxu0 0.0
    %82 = vmatprep.subr.mxu0 0.0
    %83 = vmatpush1.msra.mxu0 0.0
    %84 = vmatprep.subr.mxu0 0.0
    %85 = vmatpush1.msra.mxu0 0.0
    %86 = vmatprep.subr.mxu0 0.0
    %87 = vmatpush1.msra.mxu0 0.0
    %88 = vmatprep.subr.mxu0 0.0
    %89 = vmatpush1.msra.mxu0 0.0
    %90 = vmatprep.subr.mxu0 0.0
    %91 = vmatpush1.msra.mxu0 0.0
    %92 = vmatprep.subr.mxu0 0.0
    %93 = vmatpush1.msra.mxu0 0.0
    %94 = vmatprep.subr.mxu0 0.0
    %95 = vmatpush1.msra.mxu0 0.0
    %96 = vmatprep.subr.mxu0 0.0
    %97 = vmatpush1.msra.mxu0 0.0
    %98 = vmatprep.subr.mxu0 0.0
    %99 = vmatpush1.msra.mxu0 0.0
    %100 = vmatprep.subr.mxu0 0.0
    %101 = vmatpush1.msra.mxu0 0.0
    %102 = vmatprep.subr.mxu0 0.0
    %103 = vmatpush1.msra.mxu0 0.0
    %104 = vmatprep.subr.mxu0 0.0
    %105 = vmatpush1.msra.mxu0 0.0
    %106 = vmatprep.subr.mxu0 0.0
    %107 = vmatpush1.msra.mxu0 0.0
    %108 = vmatprep.subr.mxu0 0.0
    %109 = vmatpush1.msra.mxu0 0.0
    %110 = vmatprep.subr.mxu0 0.0
    %111 = vmatpush1.msra.mxu0 0.0
    %112 = vmatprep.subr.mxu0 0.0
    %113 = vmatpush1.msra.mxu0 0.0
    %114 = vmatprep.subr.mxu0 0.0
    %115 = vmatpush1.msra.mxu0 0.0
    %116 = vmatprep.subr.mxu0 0.0
    %117 = vmatpush1.msra.mxu0 0.0
    %118 = vmatprep.subr.mxu0 0.0
    %119 = vmatpush1.msra.mxu0 0.0
    %120 = vmatprep.mubr.f32.mxu0 0.0
    %121 = vmatmul.mubr.f32.gmra.mrb[0].mxu0 %v50
    %v122 = vpop.f32.mrb[0].mxu0
    %v123 = vadd.f32 %v46, %v122
    %v124 = vpop.f32.mrb[0].mxu0
    %125 = vdwg.mxu0
    %vm126 = vcmask 35840
    %127 = vst.msk [vmem:[#allocation7] sm:$0xf] %vm126, %v123
    // Predicated region
    $region22: #{tpu_custom_call.1} parent=1 // pred_check
      _
    $region23: #{tpu_custom_call.1} parent=1 // pred_check_branch
      %129 = sbr.rel (0) target = $region25
    $region24: #{tpu_custom_call.1} parent=1 // pred_region
      %s131 = ssub.s32 64, 64
      %132 = vsyncadd [#allocation4], %s131
      %s134 = sshll.u32 [#allocation7], 4
      %s135 = int_to_ptr.vmem [resolvable:$true] %s134
      %137 = dma.vmem_to_hbm [thread:$0]  %s135, 64, %s3, [#allocation4]
    $region25: #{tpu_custom_call.1} parent=1 // pred_fallthru
      _
    // Predicated region
    $region26: #{tpu_custom_call.1} parent=1 // pred_check
      _
    $region27: #{tpu_custom_call.1} parent=1 // pred_check_branch
      %139 = sbr.rel (0) target = $region29
    $region28: #{tpu_custom_call.1} parent=1 // pred_region
      %140 = dma.done [#allocation4], 64
    $region29: #{tpu_custom_call.1} parent=1 // pred_fallthru
      _
    %141 = vsyncpa [#allocation3], 1
    %142 = vsyncpa [#allocation6], 1
    %143 = vsyncpa [#allocation4], 1

</llo_original>
